<compile_context>
chip_gen: v5e
topology: v5e:2x2
jax: 0.10.0
libtpu: 0.0.40
codegen_flags: <defaults>
</compile_context>

<pallas_src>
import functools

import numpy as np

import jax
import jax.numpy as jnp
from jax.experimental import pallas as pl
from jax.experimental.pallas import tpu as pltpu


def _moving_avg_kernel(w_ref, x_ref, o_ref):
    """One (batch, channel-tile) grid step.

    w_ref : (l_out, L)       constant band-weight matrix (resident in VMEM)
    x_ref : (1, L, CT)       input tile, channels on the lane axis
    o_ref : (1, l_out, CT)   strided moving average for this tile
    """
    x = x_ref[0].astype(jnp.float32)          # (L, CT)
    o_ref[0] = jnp.dot(
        w_ref[...], x, preferred_element_type=jnp.float32
    ).astype(o_ref.dtype)                     # (l_out, CT) on the MXU


def _build_weight(seq_len, kernel_size, stride, pad):
    """(l_out, L) f32 matrix: replicate padding + AvgPool1d(K, stride) folded in."""
    l_out = (seq_len + 2 * pad - kernel_size) // stride + 1
    w = np.zeros((l_out, seq_len), dtype=np.float32)
    inv_k = 1.0 / kernel_size
    for t in range(l_out):
        for j in range(kernel_size):
            src = t * stride + j - pad
            src = min(max(src, 0), seq_len - 1)   # replicate-pad -> clamp
            w[t, src] += inv_k
    return jnp.asarray(w), l_out


def _round_up(n, m):
    return -(-n // m) * m


def _pick_channel_pad(num_channels):
    """Pad C to a multiple of 128 (lane-dense stores) only if overhead <= 50%."""
    if num_channels % 128 == 0:
        return num_channels
    c128 = _round_up(num_channels, 128)
    return c128 if 2 * c128 <= 3 * num_channels else num_channels


def _pick_channel_tile(c_full, seq_len, itemsize, target_bytes=4 << 20):
    """Multiple-of-128 channel tile targeting ~4 MiB input blocks (or the full dim)."""
    if c_full % 128 != 0:
        return c_full                              # full-dim block (legal, tiny C case)
    max_tile = max(128, (target_bytes // max(1, seq_len * itemsize)) // 128 * 128)
    tile = min(c_full, max_tile)
    while c_full % tile:                           # divisor of c_full, multiple of 128
        tile -= 128
    return tile


def moving_avg(x, kernel_size, stride):
    """Pallas TPU equivalent of SCINet_decompose `moving_avg(kernel_size, stride)`.

    x: [B, L, C]  ->  [B, L_out, C]   (native layout, channels on lanes)
    """
    B, L, C = x.shape
    pad = (kernel_size - 1) // 2
    w, l_out = _build_weight(L, kernel_size, stride, pad)
    assert l_out >= 1, "sequence too short for this kernel_size/stride"

    c_full = _pick_channel_pad(C)
    if c_full != C:
        x = jnp.pad(x, ((0, 0), (0, 0), (0, c_full - C)))
    c_tile = _pick_channel_tile(c_full, L, jnp.dtype(x.dtype).itemsize)

    out = pl.pallas_call(
        _moving_avg_kernel,
        out_shape=jax.ShapeDtypeStruct((B, l_out, c_full), x.dtype),
        grid_spec=pltpu.PrefetchScalarGridSpec(
            num_scalar_prefetch=0,
            grid=(B, c_full // c_tile),
            in_specs=[
                pl.BlockSpec((l_out, L), lambda b, c: (0, 0)),       # W: resident
                pl.BlockSpec((1, L, c_tile), lambda b, c: (b, 0, c)),
            ],
            out_specs=pl.BlockSpec((1, l_out, c_tile), lambda b, c: (b, 0, c)),
        ),
        compiler_params=pltpu.CompilerParams(
            dimension_semantics=("parallel", "parallel"),
        ),
    )(w, x)

    if c_full != C:
        out = out[:, :, :C]
    return out


def _moving_avg_ref(x, kernel_size, stride):
    """Pure-JAX reference mirroring the PyTorch semantics."""
    pad = (kernel_size - 1) // 2
    front = jnp.repeat(x[:, 0:1, :], pad, axis=1)
    end = jnp.repeat(x[:, -1:, :], pad, axis=1)
    xp = jnp.concatenate([front, x, end], axis=1)
    l_p = xp.shape[1]
    l_out = (l_p - kernel_size) // stride + 1
    outs = [jnp.mean(xp[:, t * stride: t * stride + kernel_size, :], axis=1)
            for t in range(l_out)]
    return jnp.stack(outs, axis=1)


if __name__ == "__main__":
    key = jax.random.PRNGKey(0)

    configs = [
        # (B, L, C, kernel_size, stride)
        (2, 16, 8, 5, 1),      # typical decomposition: odd K, stride 1, tiny C
        (2, 16, 7, 4, 2),      # even K, stride > 1, odd C
        (2, 48, 16, 25, 1),    # larger K exercising the banded weight matrix
        (2, 32, 128, 7, 1),    # lane-dense path (C multiple of 128)
    ]
    for i, (B, L, C, K, S) in enumerate(configs):
        key, sub = jax.random.split(key)
        x = jax.random.normal(sub, (B, L, C), dtype=jnp.float32)

        out = jax.block_until_ready(moving_avg(x, K, S))
        ref = _moving_avg_ref(x, K, S)

        assert out.shape == ref.shape, (i, out.shape, ref.shape)
        assert jnp.allclose(out, ref, atol=1e-5, rtol=1e-5), f"mismatch in config {i}"

    print("KERNEL_OK")
</pallas_src>

<mosaic_0001>
module attributes {stable_mosaic.version = 11 : i64} {
  func.func @_moving_avg_kernel(%arg0: i32, %arg1: i32, %arg2: memref<16x16xf32, #tpu.memory_space<vmem>>, %arg3: memref<1x16x8xf32, #tpu.memory_space<vmem>>, %arg4: memref<1x16x8xf32, #tpu.memory_space<vmem>>) attributes {dimension_semantics = [#tpu.dimension_semantics<parallel>, #tpu.dimension_semantics<parallel>], iteration_bounds = array<i64: 2, 1>, scalar_prefetch = 0 : i64, scratch_operands = 0 : i64, tpu.core_type = #tpu.core_type<tc>, window_params = [{pipeline_mode = #tpu.pipeline_mode<synchronous>, transform_indices = @transform_0, window_bounds = array<i64: 16, 16>}, {transform_indices = @transform_1, window_bounds = array<i64: 1, 16, 8>}, {transform_indices = @transform_2, window_bounds = array<i64: 1, 16, 8>}]} {
    %c0 = arith.constant 0 : index
    %c0_0 = arith.constant 0 : index
    %c0_1 = arith.constant 0 : index
    %0 = vector.load %arg3[%c0, %c0_0, %c0_1] : memref<1x16x8xf32, #tpu.memory_space<vmem>>, vector<1x16x8xf32>
    %1 = vector.shape_cast %0 : vector<1x16x8xf32> to vector<16x8xf32>
    %c0_2 = arith.constant 0 : index
    %c0_3 = arith.constant 0 : index
    %2 = vector.load %arg2[%c0_2, %c0_3] : memref<16x16xf32, #tpu.memory_space<vmem>>, vector<16x16xf32>
    %cst = arith.constant dense<0.000000e+00> : vector<16x8xf32>
    %3 = tpu.matmul %2, %1, %cst {dimension_numbers = #tpu.dot_dimension_numbers<[1], [0], [0], [1], [0, 0, 1, 1], [], []>} : vector<16x16xf32>, vector<16x8xf32>, vector<16x8xf32> -> vector<16x8xf32>
    %c0_4 = arith.constant 0 : index
    %c0_5 = arith.constant 0 : index
    %c0_6 = arith.constant 0 : index
    %4 = vector.load %arg4[%c0_4, %c0_5, %c0_6] : memref<1x16x8xf32, #tpu.memory_space<vmem>>, vector<1x16x8xf32>
    %5 = vector.shape_cast %4 : vector<1x16x8xf32> to vector<16x8xf32>
    %6 = vector.shape_cast %3 : vector<16x8xf32> to vector<1x16x8xf32>
    tpu.vector_store %arg4[%c0_4, %c0_5, %c0_6], %6 {strides = array<i32>} : memref<1x16x8xf32, #tpu.memory_space<vmem>>, vector<1x16x8xf32>,
    return
  }
  func.func @transform_0(%arg0: i32, %arg1: i32) -> (i32, i32) {
    %c0_i32 = arith.constant 0 : i32
    %c0_i32_0 = arith.constant 0 : i32
    %c0_i32_1 = arith.constant 0 : i32
    return %c0_i32, %c0_i32_0 : i32, i32
  }
  func.func @transform_1(%arg0: i32, %arg1: i32) -> (i32, i32, i32) {
    %c0_i32 = arith.constant 0 : i32
    %c0_i32_0 = arith.constant 0 : i32
    return %arg0, %c0_i32, %arg1 : i32, i32, i32
  }
  func.func @transform_2(%arg0: i32, %arg1: i32) -> (i32, i32, i32) {
    %c0_i32 = arith.constant 0 : i32
    %c0_i32_0 = arith.constant 0 : i32
    return %arg0, %c0_i32, %arg1 : i32, i32, i32
  }
}

</mosaic_0001>

<llo_original>
// kernel: tpu_custom_call.1
$region0: #{tpu_custom_call.1}
  #allocation0 [shape = 'u32[]', space=smem, size = 0x4, offset = 0x4, fixed_abs, tag = 'smem constant byte address 0x4 - core index']
  #allocation1 [shape = 'u32[72,128]{1,0:T(1,128)}', space=vmem, size = 0x9000, scoped, tag = 'internal scratch']
  %s0 = inlined_call_operand.vmem [shape: f32[16,16], index: 0, kind: input, shape index: {}]
  %s1 = inlined_call_operand.vmem [shape: f32[2,16,8], index: 1, kind: input, shape index: {}]
  %s2 = inlined_call_operand.vmem [shape: f32[2,16,8], index: 2, kind: output, shape index: {}]
  %s3 = sld [smem:[#allocation0]]
  $region41: #{tpu_custom_call.1} parent=0
    _
  %s5 = ssub.s32 1, %s3
  %s6 = scalar_select 0, %s5, %s3
  loop: start=0, step=1, limit=4
  $region2: #{tpu_custom_call.1} parent=0 // loop_pre_header
    _
  $region3: #{tpu_custom_call.1} parent=0 // loop_header
    %s8 = sphi 0, %s12
    %p9 = scmp.ge.s32.totalorder %s8, 4
    %s15 = sphi 0, %s27
    %s16 = sphi 0, %s23
    %s17 = sphi 0, %s15
    %s18 = sphi 0, %s16
    %s19 = sphi 0, %s17
    %s20 = sphi 0, %s18
    %s28 = sphi 0, %s28
    %s30 = sphi 0, %s28
    %s31 = sphi 0, %s30
    %s45 = sphi 0, %s31
    %s53 = sphi 0, %s55
    %s56 = sphi 0, %s53
    %s57 = sphi 0, %s56
    %s73 = sphi 0, %s57
    %s81 = sphi 0, %s83
    %s84 = sphi 0, %s81
    %s85 = sphi 0, %s84
    %s101 = sphi 0, %s85
  $region4: #{tpu_custom_call.1} parent=0 // loop_header_branch
    %11 = sbr.rel (%p9) target = $region8
  $region5: #{tpu_custom_call.1} parent=0 // loop_body
    %s13 = ssub.s32 %s8, 1
    %s14 = ssub.s32 %s8, 2
    %s21 = sadd.s32 1, %s16
    %p22 = scmp.ge.s32.totalorder %s21, 1
    %s23 = scalar_select %p22, 0, %s21
    %s24 = sadd.s32 1, %s15
    %s25 = scalar_select %p22, %s24, %s15
    %p26 = scmp.ge.s32.totalorder %s25, 2
    %s27 = scalar_select %p26, 0, %s25
    %s29 = sadd.s32 %s28, 1
    %p32 = scmp.eq.s32.totalorder %s8, 1
    %p33 = scmp.ne.s32.totalorder %s28, %s30
    %p34 = scmp.eq.s32.totalorder %s8, 0
    %p35 = por %p33, %p34
    %p36 = scmp.ne.s32.totalorder %s28, %s30
    %p37 = scmp.eq.s32.totalorder %s13, 1
    %p38 = por %p36, %p37
    %p39 = scmp.ne.s32.totalorder %s30, %s31
    %p40 = scmp.eq.s32.totalorder %s13, 0
    %p41 = por %p39, %p40
    %p42 = scmp.ne.s32.totalorder %s30, %s31
    %p43 = scmp.eq.s32.totalorder %s14, 1
    %p44 = por %p42, %p43
    %p46 = scmp.ne.s32.totalorder %s31, %s45
    %p47 = scmp.eq.s32.totalorder %s14, 0
    %p48 = por %p46, %p47
    %s49 = ssub.s32 %s15, %s27
    %s50 = ssub.s32 %s16, %s23
    %s51 = sor.u32 %s49, %s50
    %p52 = scmp.eq.s32.totalorder %s51, 0
    %s54 = sadd.s32 %s53, 1
    %s55 = scalar_select %p52, %s53, %s54
    %p58 = pneg %p52
    %p59 = scmp.eq.s32.totalorder %s8, 1
    %p60 = por %p58, %p59
    %p61 = scmp.ne.s32.totalorder %s53, %s56
    %p62 = scmp.eq.s32.totalorder %s8, 0
    %p63 = por %p61, %p62
    %p64 = scmp.ne.s32.totalorder %s53, %s56
    %p65 = scmp.eq.s32.totalorder %s13, 1
    %p66 = por %p64, %p65
    %p67 = scmp.ne.s32.totalorder %s56, %s57
    %p68 = scmp.eq.s32.totalorder %s13, 0
    %p69 = por %p67, %p68
    %p70 = scmp.ne.s32.totalorder %s56, %s57
    %p71 = scmp.eq.s32.totalorder %s14, 1
    %p72 = por %p70, %p71
    %p74 = scmp.ne.s32.totalorder %s57, %s73
    %p75 = scmp.eq.s32.totalorder %s14, 0
    %p76 = por %p74, %p75
    %s77 = ssub.s32 %s15, %s27
    %s78 = ssub.s32 %s16, %s23
    %s79 = sor.u32 %s77, %s78
    %p80 = scmp.eq.s32.totalorder %s79, 0
    %s82 = sadd.s32 %s81, 1
    %s83 = scalar_select %p80, %s81, %s82
    %p86 = pneg %p80
    %p87 = scmp.eq.s32.totalorder %s8, 1
    %p88 = por %p86, %p87
    %p89 = scmp.ne.s32.totalorder %s81, %s84
    %p90 = scmp.eq.s32.totalorder %s8, 0
    %p91 = por %p89, %p90
    %p92 = scmp.ne.s32.totalorder %s81, %s84
    %p93 = scmp.eq.s32.totalorder %s13, 1
    %p94 = por %p92, %p93
    %p95 = scmp.ne.s32.totalorder %s84, %s85
    %p96 = scmp.eq.s32.totalorder %s13, 0
    %p97 = por %p95, %p96
    %p98 = scmp.ne.s32.totalorder %s84, %s85
    %p99 = scmp.eq.s32.totalorder %s14, 1
    %p100 = por %p98, %p99
    %p102 = scmp.ne.s32.totalorder %s85, %s101
    %p103 = scmp.eq.s32.totalorder %s14, 0
    %p104 = por %p102, %p103
    %p105 = scmp.le.s32.totalorder 1, %s8
    %p106 = scmp.lt.s32.totalorder %s8, 3
    %p107 = pnand %p105, %p106
    %p108 = pneg %p107
    // Predicated region
    $region9: #{tpu_custom_call.1} parent=5 // pred_check
      _
    $region10: #{tpu_custom_call.1} parent=5 // pred_check_branch
      %110 = sbr.rel (%p107) target = $region12
    $region11: #{tpu_custom_call.1} parent=5 // pred_region
      %s111 = ssub.s32 %s8, 1
      // Predicated region
      $region13: #{tpu_custom_call.1} parent=11 // pred_check
        %p112 = pneg %p41
      $region14: #{tpu_custom_call.1} parent=11 // pred_check_branch
        %114 = sbr.rel (%p112) target = $region16
      $region15: #{tpu_custom_call.1} parent=11 // pred_region
        _
      $region16: #{tpu_custom_call.1} parent=11 // pred_fallthru
        _
    $region12: #{tpu_custom_call.1} parent=5 // pred_fallthru
      _
    %p115 = scmp.lt.s32.totalorder %s8, 2
    // Predicated region
    $region17: #{tpu_custom_call.1} parent=5 // pred_check
      %p116 = pneg %p115
    $region18: #{tpu_custom_call.1} parent=5 // pred_check_branch
      %118 = sbr.rel (%p116) target = $region20
    $region19: #{tpu_custom_call.1} parent=5 // pred_region
      // Predicated region
      $region21: #{tpu_custom_call.1} parent=19 // pred_check
        %p119 = pneg %p63
      $region22: #{tpu_custom_call.1} parent=19 // pred_check_branch
        %121 = sbr.rel (%p119) target = $region24
      $region23: #{tpu_custom_call.1} parent=19 // pred_region
        %p122 = scmp.lt.s32.totalorder %s15, 1
        %s123 = scalar_select %p122, %s15, 1
        %p124 = scmp.lt.s32.totalorder %s16, 0
        %s125 = scalar_select %p124, %s16, 0
        %s126 = smul.addr %s123, 2
        %s127 = sadd.s32 %s125, %s126
        %s128 = smul.addr %s127, 8
        %s129 = scalar_lea.vmem %s1, %s128
      $region24: #{tpu_custom_call.1} parent=19 // pred_fallthru
        _
    $region20: #{tpu_custom_call.1} parent=5 // pred_fallthru
      _
    %p130 = scmp.le.s32.totalorder 1, %s8
    %p131 = scmp.lt.s32.totalorder %s8, 3
    %p132 = pnand %p130, %p131
    %p133 = pneg %p132
    // Predicated region
    $region25: #{tpu_custom_call.1} parent=5 // pred_check
      _
    $region26: #{tpu_custom_call.1} parent=5 // pred_check_branch
      %135 = sbr.rel (%p132) target = $region28
    $region27: #{tpu_custom_call.1} parent=5 // pred_region
      %s136 = ssub.s32 %s8, 1
      %p137 = pneg %p41
      %p138 = pneg %p38
      %p139 = scmp.lt.s32.totalorder %s17, 1
      %s140 = scalar_select %p139, %s17, 1
      %p141 = scmp.lt.s32.totalorder %s18, 0
      %s142 = scalar_select %p141, %s18, 0
      %s143 = smul.addr %s140, 2
      %s144 = sadd.s32 %s142, %s143
      %s145 = smul.addr %s144, 8
      %s146 = scalar_lea.vmem %s1, %s145
      %p147 = pneg %p69
      %p148 = pneg %p66
      %p149 = pneg %p97
      %p150 = pneg %p94
      %p151 = scmp.lt.s32.totalorder %s17, 1
      %s152 = scalar_select %p151, %s17, 1
      %p153 = scmp.lt.s32.totalorder %s18, 0
      %s154 = scalar_select %p153, %s18, 0
      %s155 = smul.addr %s152, 2
      %s156 = sadd.s32 %s154, %s155
      %s157 = smul.addr %s156, 8
      %s158 = scalar_lea.vmem %s2, %s157
      %p159 = scmp.lt.s32.totalorder %s17, 1
      %s160 = scalar_select %p159, %s17, 1
      %p161 = scmp.lt.s32.totalorder %s18, 0
      %s162 = scalar_select %p161, %s18, 0
      %s163 = smul.addr %s160, 2
      %s164 = sadd.s32 %s162, %s163
      %s165 = smul.addr %s164, 8
      %s166 = scalar_lea.vmem %s1, %s165
      %p167 = scmp.lt.s32.totalorder %s17, 1
      %s168 = scalar_select %p167, %s17, 1
      %p169 = scmp.lt.s32.totalorder %s18, 0
      %s170 = scalar_select %p169, %s18, 0
      %s171 = smul.addr %s168, 2
      %s172 = sadd.s32 %s170, %s171
      %s173 = smul.addr %s172, 8
      %s174 = scalar_lea.vmem %s2, %s173
      %v175 = vld [vmem:[%s166] sm:$0xff]
      %v176 = vld [vmem:[%s166 + $0x8] sm:$0xff]
      %v177 = vld [vmem:[%s0] sm:$0xff]
      %v178 = vld [vmem:[%s0 + $0x8] sm:$0xff]
      %vm179 = vcmask 130048
      %v181 = vsel %vm179, %v177, 0
      %v184 = vsel %vm179, %v178, 0
      %186 = vmatpush.msra.mxu0 0.0
      %187 = vmatpush.msra.mxu0 0.0
      %188 = vmatpush.msra.mxu0 0.0
      %189 = vmatpush.msra.mxu0 0.0
      %190 = vmatpush.msra.mxu0 0.0
      %191 = vmatpush.msra.mxu0 0.0
      %192 = vmatpush.msra.mxu0 0.0
      %193 = vmatpush.msra.mxu0 0.0
      %194 = vmatpush.msra.mxu0 0.0
      %195 = vmatpush.msra.mxu0 0.0
      %196 = vmatpush.msra.mxu0 0.0
      %197 = vmatpush.msra.mxu0 0.0
      %198 = vmatpush.msra.mxu0 0.0
      %199 = vmatpush.msra.mxu0 0.0
      %200 = vmatpush.msra.mxu0 %v176
      %201 = vmatpush.msra.mxu0 %v175
      %202 = vmatmul.f32.gmra.mxu0 %v181
      %v203 = vpop.f32.mrf.mxu0
      %v204 = vadd.f32 0.0, %v203
      %205 = vmatmul.f32.gmra.mxu0 %v184
      %v206 = vpop.f32.mrf.mxu0
      %v207 = vadd.f32 0.0, %v206
      %208 = vdwg.mxu0
      %vm209 = vcmask 64512
      %210 = vst.msk [vmem:[%s174] sm:$0xff] %vm209, %v204
      %211 = vst.msk [vmem:[%s174 + $0x8] sm:$0xff] %vm209, %v207
      %p212 = scmp.lt.s32.totalorder %s17, 1
      %s213 = scalar_select %p212, %s17, 1
      %p214 = scmp.lt.s32.totalorder %s18, 0
      %s215 = scalar_select %p214, %s18, 0
      %s216 = smul.addr %s213, 2
      %s217 = sadd.s32 %s215, %s216
      %s218 = smul.addr %s217, 8
      %s219 = scalar_lea.vmem %s2, %s218
      // Predicated region
      $region29: #{tpu_custom_call.1} parent=27 // pred_check
        %p220 = pneg %p94
      $region30: #{tpu_custom_call.1} parent=27 // pred_check_branch
        %222 = sbr.rel (%p220) target = $region32
      $region31: #{tpu_custom_call.1} parent=27 // pred_region
        _
      $region32: #{tpu_custom_call.1} parent=27 // pred_fallthru
        _
    $region28: #{tpu_custom_call.1} parent=5 // pred_fallthru
      _
    %p223 = scmp.le.s32.totalorder 2, %s8
    // Predicated region
    $region33: #{tpu_custom_call.1} parent=5 // pred_check
      %p224 = pneg %p223
    $region34: #{tpu_custom_call.1} parent=5 // pred_check_branch
      %226 = sbr.rel (%p224) target = $region36
    $region35: #{tpu_custom_call.1} parent=5 // pred_region
      %s227 = ssub.s32 %s8, 2
      // Predicated region
      $region37: #{tpu_custom_call.1} parent=35 // pred_check
        %p228 = pneg %p100
      $region38: #{tpu_custom_call.1} parent=35 // pred_check_branch
        %230 = sbr.rel (%p228) target = $region40
      $region39: #{tpu_custom_call.1} parent=35 // pred_region
        %p231 = scmp.lt.s32.totalorder %s19, 1
        %s232 = scalar_select %p231, %s19, 1
        %p233 = scmp.lt.s32.totalorder %s20, 0
        %s234 = scalar_select %p233, %s20, 0
        %s235 = smul.addr %s232, 2
        %s236 = sadd.s32 %s234, %s235
        %s237 = smul.addr %s236, 8
        %s238 = scalar_lea.vmem %s2, %s237
      $region40: #{tpu_custom_call.1} parent=35 // pred_fallthru
        _
    $region36: #{tpu_custom_call.1} parent=5 // pred_fallthru
      _
  $region6: #{tpu_custom_call.1} parent=0 // loop_footer
    %s12 = sadd.s32 1, %s8
  $region7: #{tpu_custom_call.1} parent=0 // loop_footer_branch
    %7 = sbr.rel target = $region3
  $region8: #{tpu_custom_call.1} parent=0 // loop_exit
    _

</llo_original>
